<compile_context>
chip_gen: v5e
topology: v5e:2x2
jax: 0.10.0
libtpu: 0.0.40
codegen_flags: <defaults>
</compile_context>

<pallas_src>
import jax
import jax.numpy as jnp
from jax.experimental import pallas as pl
from jax.experimental.pallas import tpu as pltpu


def relu_kernel(x_ref, o_ref):
    # Single VPU max against an immediate 0.0 on one full (8, 128) vreg.
    o_ref[...] = jnp.maximum(x_ref[...], 0.0)


_SUBLANES = 8
_LANES = 128


def relu_pallas(x):
    """ReLU over an NCHW tensor via a lane-dense Pallas TPU kernel."""
    n, c, h, w = x.shape
    total = n * c * h * w

    # ReLU is elementwise: flatten the contiguous buffer (free reshape), pad
    # to a whole number of (8, 128) vregs, and present a lane-dense 2-D slab.
    flat = x.reshape(total)
    vreg_elems = _SUBLANES * _LANES
    padded = pl.cdiv(total, vreg_elems) * vreg_elems
    if padded != total:
        flat = jnp.pad(flat, (0, padded - total))
    x2d = flat.reshape(padded // _LANES, _LANES)

    out2d = pl.pallas_call(
        relu_kernel,
        out_shape=jax.ShapeDtypeStruct(x2d.shape, x2d.dtype),
        in_specs=[pl.BlockSpec(memory_space=pltpu.MemorySpace.VMEM)],
        out_specs=pl.BlockSpec(memory_space=pltpu.MemorySpace.VMEM),
    )(x2d)

    # Slice the valid elements back and restore NCHW.
    return out2d.reshape(padded)[:total].reshape(n, c, h, w)


class M:
    """JAX/Pallas equivalent of the PyTorch module M (a single ReLU)."""

    def __init__(self):
        pass  # ReLU has no parameters

    def __call__(self, x257):
        x258 = relu_pallas(x257)
        return x258


if __name__ == "__main__":
    key = jax.random.PRNGKey(0)
    # Matches torch.randn(torch.Size([1, 348, 1, 1]))
    x257 = jax.random.normal(key, (1, 348, 1, 1), dtype=jnp.float32)

    ref = jnp.maximum(x257, 0.0)

    m = M()
    out = jax.jit(m.__call__)(x257)
    out = jax.block_until_ready(out)

    assert out.shape == (1, 348, 1, 1)
    assert out.dtype == jnp.float32
    assert bool(jnp.allclose(out, ref))

    print("KERNEL_OK")
</pallas_src>

<mosaic_0001>
module attributes {stable_mosaic.version = 11 : i64} {
  func.func @relu_kernel(%arg0: memref<8x128xf32, #tpu.memory_space<vmem>>, %arg1: memref<8x128xf32, #tpu.memory_space<vmem>>) attributes {dimension_semantics = [], scalar_prefetch = 0 : i64, scratch_operands = 0 : i64, tpu.core_type = #tpu.core_type<tc>} {
    %c0 = arith.constant 0 : index
    %c0_0 = arith.constant 0 : index
    %0 = vector.load %arg0[%c0, %c0_0] : memref<8x128xf32, #tpu.memory_space<vmem>>, vector<8x128xf32>
    %cst = arith.constant 0.000000e+00 : f32
    %1 = vector.broadcast %cst : f32 to vector<8x128xf32>
    %2 = arith.maximumf %0, %1 : vector<8x128xf32>
    %c0_1 = arith.constant 0 : index
    %c0_2 = arith.constant 0 : index
    %3 = vector.load %arg1[%c0_1, %c0_2] : memref<8x128xf32, #tpu.memory_space<vmem>>, vector<8x128xf32>
    tpu.vector_store %arg1[%c0_1, %c0_2], %2 {strides = array<i32>} : memref<8x128xf32, #tpu.memory_space<vmem>>, vector<8x128xf32>,
    return
  }
}

</mosaic_0001>

<llo_original>
// kernel: a_call__.1
$region0: #{a_call__.1}
  #allocation0 [shape = 'u32[]', space=smem, size = 0x4, offset = 0x4, fixed_abs, tag = 'smem constant byte address 0x4 - core index']
  #allocation1 [shape = 'u32[72,128]{1,0:T(1,128)}', space=vmem, size = 0x9000, scoped, tag = 'internal scratch']
  %s0 = inlined_call_operand.vmem [shape: f32[8,128], index: 0, kind: input, shape index: {}]
  %s1 = inlined_call_operand.vmem [shape: f32[8,128], index: 1, kind: output, shape index: {}]
  %s2 = sld [smem:[#allocation0]]
  $region14: #{a_call__.1} parent=0
    _
  %s4 = ssub.s32 1, %s2
  %s5 = scalar_select 0, %s4, %s2
  // Predicated region
  $region2: #{a_call__.1} parent=0 // pred_check
    _
  $region3: #{a_call__.1} parent=0 // pred_check_branch
    %7 = sbr.rel (0) target = $region5
  $region4: #{a_call__.1} parent=0 // pred_region
    _
  $region5: #{a_call__.1} parent=0 // pred_fallthru
    _
  %v8 = vld [vmem:[%s0] sm:$0xff]
  %v9 = vmax.f32 %v8, 0.0
  %10 = vst [vmem:[%s1] sm:$0xff] %v9
  // Predicated region
  $region6: #{a_call__.1} parent=0 // pred_check
    _
  $region7: #{a_call__.1} parent=0 // pred_check_branch
    %12 = sbr.rel (0) target = $region9
  $region8: #{a_call__.1} parent=0 // pred_region
    _
  $region9: #{a_call__.1} parent=0 // pred_fallthru
    _
  // Predicated region
  $region10: #{a_call__.1} parent=0 // pred_check
    _
  $region11: #{a_call__.1} parent=0 // pred_check_branch
    %14 = sbr.rel (0) target = $region13
  $region12: #{a_call__.1} parent=0 // pred_region
    _
  $region13: #{a_call__.1} parent=0 // pred_fallthru
    _

</llo_original>
